<compile_context>
chip_gen: v6e
topology: v6e:2x2x1
jax: 0.10.0
libtpu: 0.0.40
codegen_flags: <defaults>
</compile_context>

<pallas_src>
import functools
import math

import jax
import jax.numpy as jnp
from jax.experimental import pallas as pl
from jax.experimental.pallas import tpu as pltpu


_LHS_DTYPE = jnp.bfloat16          # streamed matmul operand dtype (f32 accumulation)
_VMEM_BUDGET = 40 * 1024 * 1024    # working budget; v7x physical VMEM is 64 MiB / TC


def patch_embed_kernel(x_ref, w_ref, b_ref, o_ref):
    # x_ref: (TM, K) bf16 patch rows, w_ref: (K, E) bf16 resident weight,
    # b_ref: (1, E) f32 bias.  Single bf16 MXU pass, f32 accumulation.
    acc = jnp.dot(x_ref[...], w_ref[...], preferred_element_type=jnp.float32)
    o_ref[...] = (acc + b_ref[...]).astype(o_ref.dtype)


def prepare_patch_embed_params(w, b):
    """One-time param transform: (E,C,P,P), (E,) -> (K,E) bf16 weight, (1,E) f32 bias."""
    E = w.shape[0]
    w2 = w.reshape(E, -1).T.astype(_LHS_DTYPE)   # (K, E) matmul layout
    b2 = b.reshape(1, E).astype(jnp.float32)     # bias kept in f32
    return w2, b2


def _vmem_bytes(tm, K, E, lhs_itemsize, w_itemsize, out_itemsize):
    return (2 * tm * K * lhs_itemsize      # double-buffered lhs tiles
            + K * E * w_itemsize           # single-buffered weight
            + E * 4                        # bias
            + 2 * tm * E * out_itemsize)   # double-buffered output tiles


def patch_embedding(x, w2, b2, patch_size, *, tm=1024):
    """x: (B,C,H,W).  w2/b2: prepared params (see prepare_patch_embed_params).

    Returns (B, N, E) in x.dtype, N = (H/P)*(W/P).
    """
    B, C, H, W = x.shape
    P = patch_size
    assert H % P == 0 and W % P == 0, "image resolution must be divisible by patch_size"
    K, E = w2.shape
    assert K == C * P * P
    Hp, Wp = H // P, W // P
    N = Hp * Wp
    M = B * N

    # im2col + bf16 cast; XLA fuses transpose+reshape+convert into one producer
    # (x is read once, bf16 patches written once).
    # TODO(synk): fuse the im2col into the kernel (in-kernel (C,P,Wp,P)->(Wp,K)
    # relayout) so the bf16 patch buffer is never materialized in HBM.
    patches = (
        x.reshape(B, C, Hp, P, Wp, P)
        .transpose(0, 2, 4, 1, 3, 5)
        .reshape(M, K)
        .astype(_LHS_DTYPE)
    )

    lhs_itemsize = jnp.dtype(_LHS_DTYPE).itemsize
    w_itemsize = jnp.dtype(w2.dtype).itemsize
    out_itemsize = jnp.dtype(x.dtype).itemsize

    # Token-tile rows: multiple of 8, large enough to amortize the ~0.35us/step
    # pipeline overhead, shrunk to fit the VMEM budget (re-derived for v7x).
    if M <= tm:
        tm_eff = M                       # block == full dim -> no (8,128) constraint
    else:
        tm_eff = tm                      # multiple of 8
        while (tm_eff > 256 and
               _vmem_bytes(tm_eff, K, E, lhs_itemsize, w_itemsize, out_itemsize)
               > _VMEM_BUDGET):
            tm_eff //= 2
    grid = (pl.cdiv(M, tm_eff),)         # no padding: partial last block is masked

    est = _vmem_bytes(tm_eff, K, E, lhs_itemsize, w_itemsize, out_itemsize)
    vmem_limit = int(min(max(est + (8 << 20), 16 << 20), 48 << 20))

    cost = pl.CostEstimate(
        flops=2 * M * K * E,
        transcendentals=0,
        bytes_accessed=(M * K * lhs_itemsize + K * E * w_itemsize
                        + E * 4 + M * E * out_itemsize),
    )

    out = pl.pallas_call(
        patch_embed_kernel,
        out_shape=jax.ShapeDtypeStruct((M, E), x.dtype),
        grid=grid,
        in_specs=[
            pl.BlockSpec((tm_eff, K), lambda i: (i, 0)),            # streamed token tiles
            pl.BlockSpec((K, E), lambda i: (0, 0),
                         pipeline_mode=pl.Buffered(1)),             # resident weight
            pl.BlockSpec((1, E), lambda i: (0, 0),
                         pipeline_mode=pl.Buffered(1)),             # resident bias
        ],
        out_specs=pl.BlockSpec((tm_eff, E), lambda i: (i, 0)),
        compiler_params=pltpu.CompilerParams(
            dimension_semantics=("parallel",),
            vmem_limit_bytes=vmem_limit,
        ),
        cost_estimate=cost,
    )(patches, w2, b2)

    return out.reshape(B, N, E)


def reference_patch_embedding(x, w, b, patch_size):
    """Pure-JAX f32 reference: conv(stride=P) -> flatten(2,3) -> permute(0,2,1)."""
    y = jax.lax.conv_general_dilated(
        x, w,
        window_strides=(patch_size, patch_size),
        padding="VALID",
        dimension_numbers=("NCHW", "OIHW", "NCHW"),
        precision=jax.lax.Precision.HIGHEST,
    )
    y = y + b.reshape(1, -1, 1, 1)
    B, E, Hp, Wp = y.shape
    return y.reshape(B, E, Hp * Wp).transpose(0, 2, 1)


if __name__ == "__main__":
    # Small shapes consistent with the module's forward: batch=2, in_channels=3,
    # 64x64 image, patch_size=16 -> N=16 patches; embedding dim scaled to 256
    # (multiple of 256 -> lane-dense stores and full 256-wide MXU columns).
    B, C, IMG, P, E = 2, 3, 64, 16, 256

    key = jax.random.PRNGKey(0)
    kx, kw, kb = jax.random.split(key, 3)

    x = jax.random.normal(kx, (B, C, IMG, IMG), dtype=jnp.float32)

    # PyTorch Conv2d default init: U(-1/sqrt(fan_in), 1/sqrt(fan_in)).
    fan_in = C * P * P
    bound = 1.0 / math.sqrt(fan_in)
    w = jax.random.uniform(kw, (E, C, P, P), jnp.float32, -bound, bound)
    b = jax.random.uniform(kb, (E,), jnp.float32, -bound, bound)

    # One-time parameter transform (hoisted out of the per-call path).
    w2, b2 = prepare_patch_embed_params(w, b)

    fwd = jax.jit(functools.partial(patch_embedding, patch_size=P))
    out = fwd(x, w2, b2)
    jax.block_until_ready(out)

    ref = reference_patch_embedding(x, w, b, P)
    N = (IMG // P) * (IMG // P)
    assert out.shape == (B, N, E), out.shape
    # bf16 operands + f32 accumulation: expected error ~ O(2^-9 * sqrt(K)) vs the
    # f32 conv reference; 2e-2 tolerance has >2x margin for K=768.
    max_err = float(jnp.max(jnp.abs(out - ref)))
    assert jnp.allclose(out, ref, atol=2e-2, rtol=2e-2), f"mismatch vs reference ({max_err})"

    print("KERNEL_OK")
</pallas_src>

<mosaic_0001>
module attributes {stable_mosaic.version = 11 : i64} {
  func.func @patch_embed_kernel(%arg0: i32, %arg1: memref<32x768xbf16, #tpu.memory_space<vmem>>, %arg2: memref<768x256xbf16, #tpu.memory_space<vmem>>, %arg3: memref<1x256xf32, #tpu.memory_space<vmem>>, %arg4: memref<32x256xf32, #tpu.memory_space<vmem>>) attributes {dimension_semantics = [#tpu.dimension_semantics<parallel>], iteration_bounds = array<i64: 1>, scalar_prefetch = 0 : i64, scratch_operands = 0 : i64, tpu.core_type = #tpu.core_type<tc>, window_params = [{transform_indices = @transform_0, window_bounds = array<i64: 32, 768>}, {pipeline_mode = #tpu.pipeline_mode<synchronous>, transform_indices = @transform_1, window_bounds = array<i64: 768, 256>}, {pipeline_mode = #tpu.pipeline_mode<synchronous>, transform_indices = @transform_2, window_bounds = array<i64: 1, 256>}, {transform_indices = @transform_3, window_bounds = array<i64: 32, 256>}]} {
    %c0 = arith.constant 0 : index
    %c0_0 = arith.constant 0 : index
    %0 = vector.load %arg1[%c0, %c0_0] : memref<32x768xbf16, #tpu.memory_space<vmem>>, vector<32x768xbf16>
    %c0_1 = arith.constant 0 : index
    %c0_2 = arith.constant 0 : index
    %1 = vector.load %arg2[%c0_1, %c0_2] : memref<768x256xbf16, #tpu.memory_space<vmem>>, vector<768x256xbf16>
    %cst = arith.constant dense<0.000000e+00> : vector<32x256xf32>
    %2 = tpu.matmul %0, %1, %cst {dimension_numbers = #tpu.dot_dimension_numbers<[1], [0], [0], [1], [0, 0, 1, 1], [], []>} : vector<32x768xbf16>, vector<768x256xbf16>, vector<32x256xf32> -> vector<32x256xf32>
    %c0_3 = arith.constant 0 : index
    %c0_4 = arith.constant 0 : index
    %3 = vector.load %arg3[%c0_3, %c0_4] : memref<1x256xf32, #tpu.memory_space<vmem>>, vector<1x256xf32>
    %4 = vector.broadcast %3 : vector<1x256xf32> to vector<32x256xf32>
    %5 = arith.addf %2, %4 : vector<32x256xf32>
    %c0_5 = arith.constant 0 : index
    %c0_6 = arith.constant 0 : index
    %6 = vector.load %arg4[%c0_5, %c0_6] : memref<32x256xf32, #tpu.memory_space<vmem>>, vector<32x256xf32>
    tpu.vector_store %arg4[%c0_5, %c0_6], %5 {strides = array<i32>} : memref<32x256xf32, #tpu.memory_space<vmem>>, vector<32x256xf32>,
    return
  }
  func.func @transform_0(%arg0: i32) -> (i32, i32) {
    %c0_i32 = arith.constant 0 : i32
    %c0_i32_0 = arith.constant 0 : i32
    return %arg0, %c0_i32 : i32, i32
  }
  func.func @transform_1(%arg0: i32) -> (i32, i32) {
    %c0_i32 = arith.constant 0 : i32
    %c0_i32_0 = arith.constant 0 : i32
    %c0_i32_1 = arith.constant 0 : i32
    return %c0_i32, %c0_i32_0 : i32, i32
  }
  func.func @transform_2(%arg0: i32) -> (i32, i32) {
    %c0_i32 = arith.constant 0 : i32
    %c0_i32_0 = arith.constant 0 : i32
    %c0_i32_1 = arith.constant 0 : i32
    return %c0_i32, %c0_i32_0 : i32, i32
  }
  func.func @transform_3(%arg0: i32) -> (i32, i32) {
    %c0_i32 = arith.constant 0 : i32
    %c0_i32_0 = arith.constant 0 : i32
    return %arg0, %c0_i32 : i32, i32
  }
}

</mosaic_0001>

<llo_original>
// kernel: patch_embedding.1
$region0: #{patch_embedding.1}
  #allocation0 [shape = 'u32[]', space=smem, size = 0x4, offset = 0x4, fixed_abs, tag = 'smem constant byte address 0x4 - core index']
  #allocation1 [shape = 'u32[144,128]{1,0:T(1,128)}', space=vmem, size = 0x12000, scoped, tag = 'internal scratch']
  %s0 = inlined_call_operand.vmem [shape: bf16[32,768], index: 0, kind: input, shape index: {}]
  %s1 = inlined_call_operand.vmem [shape: bf16[768,256], index: 1, kind: input, shape index: {}]
  %s2 = inlined_call_operand.vmem [shape: f32[1,256], index: 2, kind: input, shape index: {}]
  %s3 = inlined_call_operand.hbm [shape: f32[32,256], index: 3, kind: output, shape index: {}]
  %s4 = sld [smem:[#allocation0]]
  $region22: #{patch_embedding.1} parent=0
    _
  %s6 = ssub.s32 1, %s4
  %s7 = scalar_select 0, %s6, %s4
  $region1: #{patch_embedding.1} parent=0
    #allocation2 [shape = 'u8[32768]{0}', space=vmem, size = 0x8000, scoped, tag = 'output window, operand 0, single buffered']
    #allocation3 [shape = 's32[1]{0}', space=sflag, size = 0x4, scoped, tag = 'scoped memory for patch_embedding.1']
    %8 = vsyncpa [#allocation3], 0
    // Predicated region
    $region2: #{patch_embedding.1} parent=1 // pred_check
      _
    $region3: #{patch_embedding.1} parent=1 // pred_check_branch
      %10 = sbr.rel (0) target = $region5
    $region4: #{patch_embedding.1} parent=1 // pred_region
      _
    $region5: #{patch_embedding.1} parent=1 // pred_fallthru
      _
    // Predicated region
    $region6: #{patch_embedding.1} parent=1 // pred_check
      _
    $region7: #{patch_embedding.1} parent=1 // pred_check_branch
      %12 = sbr.rel (0) target = $region9
    $region8: #{patch_embedding.1} parent=1 // pred_region
      _
    $region9: #{patch_embedding.1} parent=1 // pred_fallthru
      _
    // Predicated region
    $region10: #{patch_embedding.1} parent=1 // pred_check
      _
    $region11: #{patch_embedding.1} parent=1 // pred_check_branch
      %14 = sbr.rel (0) target = $region13
    $region12: #{patch_embedding.1} parent=1 // pred_region
      _
    $region13: #{patch_embedding.1} parent=1 // pred_fallthru
      _
    %v15 = vld [vmem:[%s0] sm:$0xff]
    %v16 = vld [vmem:[%s0 + $0x8] sm:$0xff]
    %v17 = vld [vmem:[%s0 + $0x10] sm:$0xff]
    %v18 = vld [vmem:[%s0 + $0x18] sm:$0xff]
    %v19 = vld [vmem:[%s0 + $0x20] sm:$0xff]
    %v20 = vld [vmem:[%s0 + $0x28] sm:$0xff]
    %v21 = vld [vmem:[%s0 + $0x30] sm:$0xff]
    %v22 = vld [vmem:[%s0 + $0x38] sm:$0xff]
    %v23 = vld [vmem:[%s0 + $0x40] sm:$0xff]
    %v24 = vld [vmem:[%s0 + $0x48] sm:$0xff]
    %v25 = vld [vmem:[%s0 + $0x50] sm:$0xff]
    %v26 = vld [vmem:[%s0 + $0x58] sm:$0xff]
    %v27 = vld [vmem:[%s1] sm:$0xff]
    %v28 = vld [vmem:[%s1 + $0x8] sm:$0xff]
    %v29 = vld [vmem:[%s1 + $0x10] sm:$0xff]
    %v30 = vld [vmem:[%s1 + $0x18] sm:$0xff]
    %v31 = vld [vmem:[%s1 + $0x20] sm:$0xff]
    %v32 = vld [vmem:[%s1 + $0x28] sm:$0xff]
    %v33 = vld [vmem:[%s1 + $0x30] sm:$0xff]
    %v34 = vld [vmem:[%s1 + $0x38] sm:$0xff]
    %v35 = vld [vmem:[%s1 + $0x40] sm:$0xff]
    %v36 = vld [vmem:[%s1 + $0x48] sm:$0xff]
    %v37 = vld [vmem:[%s1 + $0x50] sm:$0xff]
    %v38 = vld [vmem:[%s1 + $0x58] sm:$0xff]
    %v39 = vld [vmem:[%s1 + $0x60] sm:$0xff]
    %v40 = vld [vmem:[%s1 + $0x68] sm:$0xff]
    %v41 = vld [vmem:[%s1 + $0x70] sm:$0xff]
    %v42 = vld [vmem:[%s1 + $0x78] sm:$0xff]
    %v43 = vld [vmem:[%s1 + $0x80] sm:$0xff]
    %v44 = vld [vmem:[%s1 + $0x88] sm:$0xff]
    %v45 = vld [vmem:[%s1 + $0x90] sm:$0xff]
    %v46 = vld [vmem:[%s1 + $0x98] sm:$0xff]
    %v47 = vld [vmem:[%s1 + $0xa0] sm:$0xff]
    %v48 = vld [vmem:[%s1 + $0xa8] sm:$0xff]
    %v49 = vld [vmem:[%s1 + $0xb0] sm:$0xff]
    %v50 = vld [vmem:[%s1 + $0xb8] sm:$0xff]
    %v51 = vld [vmem:[%s1 + $0xc0] sm:$0xff]
    %v52 = vld [vmem:[%s1 + $0xc8] sm:$0xff]
    %v53 = vld [vmem:[%s1 + $0xd0] sm:$0xff]
    %v54 = vld [vmem:[%s1 + $0xd8] sm:$0xff]
    %v55 = vld [vmem:[%s1 + $0xe0] sm:$0xff]
    %v56 = vld [vmem:[%s1 + $0xe8] sm:$0xff]
    %v57 = vld [vmem:[%s1 + $0xf0] sm:$0xff]
    %v58 = vld [vmem:[%s1 + $0xf8] sm:$0xff]
    %v59 = vld [vmem:[%s1 + $0x100] sm:$0xff]
    %v60 = vld [vmem:[%s1 + $0x108] sm:$0xff]
    %v61 = vld [vmem:[%s1 + $0x110] sm:$0xff]
    %v62 = vld [vmem:[%s1 + $0x118] sm:$0xff]
    %v63 = vld [vmem:[%s1 + $0x120] sm:$0xff]
    %v64 = vld [vmem:[%s1 + $0x128] sm:$0xff]
    %v65 = vld [vmem:[%s1 + $0x130] sm:$0xff]
    %v66 = vld [vmem:[%s1 + $0x138] sm:$0xff]
    %v67 = vld [vmem:[%s1 + $0x140] sm:$0xff]
    %v68 = vld [vmem:[%s1 + $0x148] sm:$0xff]
    %v69 = vld [vmem:[%s1 + $0x150] sm:$0xff]
    %v70 = vld [vmem:[%s1 + $0x158] sm:$0xff]
    %v71 = vld [vmem:[%s1 + $0x160] sm:$0xff]
    %v72 = vld [vmem:[%s1 + $0x168] sm:$0xff]
    %v73 = vld [vmem:[%s1 + $0x170] sm:$0xff]
    %v74 = vld [vmem:[%s1 + $0x178] sm:$0xff]
    %v75 = vld [vmem:[%s1 + $0x180] sm:$0xff]
    %v76 = vld [vmem:[%s1 + $0x188] sm:$0xff]
    %v77 = vld [vmem:[%s1 + $0x190] sm:$0xff]
    %v78 = vld [vmem:[%s1 + $0x198] sm:$0xff]
    %v79 = vld [vmem:[%s1 + $0x1a0] sm:$0xff]
    %v80 = vld [vmem:[%s1 + $0x1a8] sm:$0xff]
    %v81 = vld [vmem:[%s1 + $0x1b0] sm:$0xff]
    %v82 = vld [vmem:[%s1 + $0x1b8] sm:$0xff]
    %v83 = vld [vmem:[%s1 + $0x1c0] sm:$0xff]
    %v84 = vld [vmem:[%s1 + $0x1c8] sm:$0xff]
    %v85 = vld [vmem:[%s1 + $0x1d0] sm:$0xff]
    %v86 = vld [vmem:[%s1 + $0x1d8] sm:$0xff]
    %v87 = vld [vmem:[%s1 + $0x1e0] sm:$0xff]
    %v88 = vld [vmem:[%s1 + $0x1e8] sm:$0xff]
    %v89 = vld [vmem:[%s1 + $0x1f0] sm:$0xff]
    %v90 = vld [vmem:[%s1 + $0x1f8] sm:$0xff]
    %v91 = vld [vmem:[%s1 + $0x200] sm:$0xff]
    %v92 = vld [vmem:[%s1 + $0x208] sm:$0xff]
    %v93 = vld [vmem:[%s1 + $0x210] sm:$0xff]
    %v94 = vld [vmem:[%s1 + $0x218] sm:$0xff]
    %v95 = vld [vmem:[%s1 + $0x220] sm:$0xff]
    %v96 = vld [vmem:[%s1 + $0x228] sm:$0xff]
    %v97 = vld [vmem:[%s1 + $0x230] sm:$0xff]
    %v98 = vld [vmem:[%s1 + $0x238] sm:$0xff]
    %v99 = vld [vmem:[%s1 + $0x240] sm:$0xff]
    %v100 = vld [vmem:[%s1 + $0x248] sm:$0xff]
    %v101 = vld [vmem:[%s1 + $0x250] sm:$0xff]
    %v102 = vld [vmem:[%s1 + $0x258] sm:$0xff]
    %v103 = vld [vmem:[%s1 + $0x260] sm:$0xff]
    %v104 = vld [vmem:[%s1 + $0x268] sm:$0xff]
    %v105 = vld [vmem:[%s1 + $0x270] sm:$0xff]
    %v106 = vld [vmem:[%s1 + $0x278] sm:$0xff]
    %v107 = vld [vmem:[%s1 + $0x280] sm:$0xff]
    %v108 = vld [vmem:[%s1 + $0x288] sm:$0xff]
    %v109 = vld [vmem:[%s1 + $0x290] sm:$0xff]
    %v110 = vld [vmem:[%s1 + $0x298] sm:$0xff]
    %v111 = vld [vmem:[%s1 + $0x2a0] sm:$0xff]
    %v112 = vld [vmem:[%s1 + $0x2a8] sm:$0xff]
    %v113 = vld [vmem:[%s1 + $0x2b0] sm:$0xff]
    %v114 = vld [vmem:[%s1 + $0x2b8] sm:$0xff]
    %v115 = vld [vmem:[%s1 + $0x2c0] sm:$0xff]
    %v116 = vld [vmem:[%s1 + $0x2c8] sm:$0xff]
    %v117 = vld [vmem:[%s1 + $0x2d0] sm:$0xff]
    %v118 = vld [vmem:[%s1 + $0x2d8] sm:$0xff]
    %v119 = vld [vmem:[%s1 + $0x2e0] sm:$0xff]
    %v120 = vld [vmem:[%s1 + $0x2e8] sm:$0xff]
    %v121 = vld [vmem:[%s1 + $0x2f0] sm:$0xff]
    %v122 = vld [vmem:[%s1 + $0x2f8] sm:$0xff]
    %v123 = vld [vmem:[%s2] sm:$0x3]
    %v125 = vlaneseq
    %v126 = vshrl.u32 %v125, 7
    %v127 = vsub.s32 0, %v126
    %v128 = vrot.slane %v123, %v127
    %v129 = vlaneseq
    %v130 = vshrl.u32 %v129, 7
    %v131 = vsub.s32 1, %v130
    %v132 = vrot.slane %v123, %v131
    %v147 = vunpack.c.l.b16 %v15
    %v148 = vunpack.c.h.b16 %v15
    %v149 = vunpack.c.l.b16 %v16
    %v150 = vunpack.c.h.b16 %v16
    %v151 = vunpack.c.l.b16 %v17
    %v152 = vunpack.c.h.b16 %v17
    %v153 = vunpack.c.l.b16 %v18
    %v154 = vunpack.c.h.b16 %v18
    %v155 = vunpack.c.l.b16 %v19
    %v156 = vunpack.c.h.b16 %v19
    %v157 = vunpack.c.l.b16 %v20
    %v158 = vunpack.c.h.b16 %v20
    %v159 = vunpack.c.l.b16 %v21
    %v160 = vunpack.c.h.b16 %v21
    %v161 = vunpack.c.l.b16 %v22
    %v162 = vunpack.c.h.b16 %v22
    %v163 = vunpack.c.l.b16 %v23
    %v164 = vunpack.c.h.b16 %v23
    %v165 = vunpack.c.l.b16 %v24
    %v166 = vunpack.c.h.b16 %v24
    %v167 = vunpack.c.l.b16 %v25
    %v168 = vunpack.c.h.b16 %v25
    %v169 = vunpack.c.l.b16 %v26
    %v170 = vunpack.c.h.b16 %v26
    %v171 = vpack.c.b16 %v153, %v147
    %v172 = vpack.c.b16 %v154, %v148
    %v173 = vpack.c.b16 %v155, %v149
    %v174 = vpack.c.b16 %v156, %v150
    %v175 = vpack.c.b16 %v157, %v151
    %v176 = vpack.c.b16 %v158, %v152
    %v177 = vpack.c.b16 %v165, %v159
    %v178 = vpack.c.b16 %v166, %v160
    %v179 = vpack.c.b16 %v167, %v161
    %v180 = vpack.c.b16 %v168, %v162
    %v181 = vpack.c.b16 %v169, %v163
    %v182 = vpack.c.b16 %v170, %v164
    %v291 = vunpack.c.l.b16 %v27
    %v292 = vunpack.c.h.b16 %v27
    %v293 = vunpack.c.l.b16 %v28
    %v294 = vunpack.c.h.b16 %v28
    %v295 = vunpack.c.l.b16 %v29
    %v296 = vunpack.c.h.b16 %v29
    %v297 = vunpack.c.l.b16 %v30
    %v298 = vunpack.c.h.b16 %v30
    %v299 = vunpack.c.l.b16 %v31
    %v300 = vunpack.c.h.b16 %v31
    %v301 = vunpack.c.l.b16 %v32
    %v302 = vunpack.c.h.b16 %v32
    %v303 = vunpack.c.l.b16 %v33
    %v304 = vunpack.c.h.b16 %v33
    %v305 = vunpack.c.l.b16 %v34
    %v306 = vunpack.c.h.b16 %v34
    %v307 = vunpack.c.l.b16 %v35
    %v308 = vunpack.c.h.b16 %v35
    %v309 = vunpack.c.l.b16 %v36
    %v310 = vunpack.c.h.b16 %v36
    %v311 = vunpack.c.l.b16 %v37
    %v312 = vunpack.c.h.b16 %v37
    %v313 = vunpack.c.l.b16 %v38
    %v314 = vunpack.c.h.b16 %v38
    %v315 = vunpack.c.l.b16 %v39
    %v316 = vunpack.c.h.b16 %v39
    %v317 = vunpack.c.l.b16 %v40
    %v318 = vunpack.c.h.b16 %v40
    %v319 = vunpack.c.l.b16 %v41
    %v320 = vunpack.c.h.b16 %v41
    %v321 = vunpack.c.l.b16 %v42
    %v322 = vunpack.c.h.b16 %v42
    %v323 = vunpack.c.l.b16 %v43
    %v324 = vunpack.c.h.b16 %v43
    %v325 = vunpack.c.l.b16 %v44
    %v326 = vunpack.c.h.b16 %v44
    %v327 = vunpack.c.l.b16 %v45
    %v328 = vunpack.c.h.b16 %v45
    %v329 = vunpack.c.l.b16 %v46
    %v330 = vunpack.c.h.b16 %v46
    %v331 = vunpack.c.l.b16 %v47
    %v332 = vunpack.c.h.b16 %v47
    %v333 = vunpack.c.l.b16 %v48
    %v334 = vunpack.c.h.b16 %v48
    %v335 = vunpack.c.l.b16 %v49
    %v336 = vunpack.c.h.b16 %v49
    %v337 = vunpack.c.l.b16 %v50
    %v338 = vunpack.c.h.b16 %v50
    %v339 = vunpack.c.l.b16 %v51
    %v340 = vunpack.c.h.b16 %v51
    %v341 = vunpack.c.l.b16 %v52
    %v342 = vunpack.c.h.b16 %v52
    %v343 = vunpack.c.l.b16 %v53
    %v344 = vunpack.c.h.b16 %v53
    %v345 = vunpack.c.l.b16 %v54
    %v346 = vunpack.c.h.b16 %v54
    %v347 = vunpack.c.l.b16 %v55
    %v348 = vunpack.c.h.b16 %v55
    %v349 = vunpack.c.l.b16 %v56
    %v350 = vunpack.c.h.b16 %v56
    %v351 = vunpack.c.l.b16 %v57
    %v352 = vunpack.c.h.b16 %v57
    %v353 = vunpack.c.l.b16 %v58
    %v354 = vunpack.c.h.b16 %v58
    %v355 = vunpack.c.l.b16 %v59
    %v356 = vunpack.c.h.b16 %v59
    %v357 = vunpack.c.l.b16 %v60
    %v358 = vunpack.c.h.b16 %v60
    %v359 = vunpack.c.l.b16 %v61
    %v360 = vunpack.c.h.b16 %v61
    %v361 = vunpack.c.l.b16 %v62
    %v362 = vunpack.c.h.b16 %v62
    %v363 = vunpack.c.l.b16 %v63
    %v364 = vunpack.c.h.b16 %v63
    %v365 = vunpack.c.l.b16 %v64
    %v366 = vunpack.c.h.b16 %v64
    %v367 = vunpack.c.l.b16 %v65
    %v368 = vunpack.c.h.b16 %v65
    %v369 = vunpack.c.l.b16 %v66
    %v370 = vunpack.c.h.b16 %v66
    %v371 = vunpack.c.l.b16 %v67
    %v372 = vunpack.c.h.b16 %v67
    %v373 = vunpack.c.l.b16 %v68
    %v374 = vunpack.c.h.b16 %v68
    %v375 = vunpack.c.l.b16 %v69
    %v376 = vunpack.c.h.b16 %v69
    %v377 = vunpack.c.l.b16 %v70
    %v378 = vunpack.c.h.b16 %v70
    %v379 = vunpack.c.l.b16 %v71
    %v380 = vunpack.c.h.b16 %v71
    %v381 = vunpack.c.l.b16 %v72
    %v382 = vunpack.c.h.b16 %v72
    %v383 = vunpack.c.l.b16 %v73
    %v384 = vunpack.c.h.b16 %v73
    %v385 = vunpack.c.l.b16 %v74
    %v386 = vunpack.c.h.b16 %v74
    %v387 = vunpack.c.l.b16 %v75
    %v388 = vunpack.c.h.b16 %v75
    %v389 = vunpack.c.l.b16 %v76
    %v390 = vunpack.c.h.b16 %v76
    %v391 = vunpack.c.l.b16 %v77
    %v392 = vunpack.c.h.b16 %v77
    %v393 = vunpack.c.l.b16 %v78
    %v394 = vunpack.c.h.b16 %v78
    %v395 = vunpack.c.l.b16 %v79
    %v396 = vunpack.c.h.b16 %v79
    %v397 = vunpack.c.l.b16 %v80
    %v398 = vunpack.c.h.b16 %v80
    %v399 = vunpack.c.l.b16 %v81
    %v400 = vunpack.c.h.b16 %v81
    %v401 = vunpack.c.l.b16 %v82
    %v402 = vunpack.c.h.b16 %v82
    %v403 = vunpack.c.l.b16 %v83
    %v404 = vunpack.c.h.b16 %v83
    %v405 = vunpack.c.l.b16 %v84
    %v406 = vunpack.c.h.b16 %v84
    %v407 = vunpack.c.l.b16 %v85
    %v408 = vunpack.c.h.b16 %v85
    %v409 = vunpack.c.l.b16 %v86
    %v410 = vunpack.c.h.b16 %v86
    %v411 = vunpack.c.l.b16 %v87
    %v412 = vunpack.c.h.b16 %v87
    %v413 = vunpack.c.l.b16 %v88
    %v414 = vunpack.c.h.b16 %v88
    %v415 = vunpack.c.l.b16 %v89
    %v416 = vunpack.c.h.b16 %v89
    %v417 = vunpack.c.l.b16 %v90
    %v418 = vunpack.c.h.b16 %v90
    %v419 = vunpack.c.l.b16 %v91
    %v420 = vunpack.c.h.b16 %v91
    %v421 = vunpack.c.l.b16 %v92
    %v422 = vunpack.c.h.b16 %v92
    %v423 = vunpack.c.l.b16 %v93
    %v424 = vunpack.c.h.b16 %v93
    %v425 = vunpack.c.l.b16 %v94
    %v426 = vunpack.c.h.b16 %v94
    %v427 = vunpack.c.l.b16 %v95
    %v428 = vunpack.c.h.b16 %v95
    %v429 = vunpack.c.l.b16 %v96
    %v430 = vunpack.c.h.b16 %v96
    %v431 = vunpack.c.l.b16 %v97
    %v432 = vunpack.c.h.b16 %v97
    %v433 = vunpack.c.l.b16 %v98
    %v434 = vunpack.c.h.b16 %v98
    %v435 = vunpack.c.l.b16 %v99
    %v436 = vunpack.c.h.b16 %v99
    %v437 = vunpack.c.l.b16 %v100
    %v438 = vunpack.c.h.b16 %v100
    %v439 = vunpack.c.l.b16 %v101
    %v440 = vunpack.c.h.b16 %v101
    %v441 = vunpack.c.l.b16 %v102
    %v442 = vunpack.c.h.b16 %v102
    %v443 = vunpack.c.l.b16 %v103
    %v444 = vunpack.c.h.b16 %v103
    %v445 = vunpack.c.l.b16 %v104
    %v446 = vunpack.c.h.b16 %v104
    %v447 = vunpack.c.l.b16 %v105
    %v448 = vunpack.c.h.b16 %v105
    %v449 = vunpack.c.l.b16 %v106
    %v450 = vunpack.c.h.b16 %v106
    %v451 = vunpack.c.l.b16 %v107
    %v452 = vunpack.c.h.b16 %v107
    %v453 = vunpack.c.l.b16 %v108
    %v454 = vunpack.c.h.b16 %v108
    %v455 = vunpack.c.l.b16 %v109
    %v456 = vunpack.c.h.b16 %v109
    %v457 = vunpack.c.l.b16 %v110
    %v458 = vunpack.c.h.b16 %v110
    %v459 = vunpack.c.l.b16 %v111
    %v460 = vunpack.c.h.b16 %v111
    %v461 = vunpack.c.l.b16 %v112
    %v462 = vunpack.c.h.b16 %v112
    %v463 = vunpack.c.l.b16 %v113
    %v464 = vunpack.c.h.b16 %v113
    %v465 = vunpack.c.l.b16 %v114
    %v466 = vunpack.c.h.b16 %v114
    %v467 = vunpack.c.l.b16 %v115
    %v468 = vunpack.c.h.b16 %v115
    %v469 = vunpack.c.l.b16 %v116
    %v470 = vunpack.c.h.b16 %v116
    %v471 = vunpack.c.l.b16 %v117
    %v472 = vunpack.c.h.b16 %v117
    %v473 = vunpack.c.l.b16 %v118
    %v474 = vunpack.c.h.b16 %v118
    %v475 = vunpack.c.l.b16 %v119
    %v476 = vunpack.c.h.b16 %v119
    %v477 = vunpack.c.l.b16 %v120
    %v478 = vunpack.c.h.b16 %v120
    %v479 = vunpack.c.l.b16 %v121
    %v480 = vunpack.c.h.b16 %v121
    %v481 = vunpack.c.l.b16 %v122
    %v482 = vunpack.c.h.b16 %v122
    %v483 = vpack.c.b16 %v293, %v291
    %v484 = vpack.c.b16 %v294, %v292
    %v485 = vpack.c.b16 %v297, %v295
    %v486 = vpack.c.b16 %v298, %v296
    %v487 = vpack.c.b16 %v301, %v299
    %v488 = vpack.c.b16 %v302, %v300
    %v489 = vpack.c.b16 %v305, %v303
    %v490 = vpack.c.b16 %v306, %v304
    %v491 = vpack.c.b16 %v309, %v307
    %v492 = vpack.c.b16 %v310, %v308
    %v493 = vpack.c.b16 %v313, %v311
    %v494 = vpack.c.b16 %v314, %v312
    %v495 = vpack.c.b16 %v317, %v315
    %v496 = vpack.c.b16 %v318, %v316
    %v497 = vpack.c.b16 %v321, %v319
    %v498 = vpack.c.b16 %v322, %v320
    %v499 = vpack.c.b16 %v325, %v323
    %v500 = vpack.c.b16 %v326, %v324
    %v501 = vpack.c.b16 %v329, %v327
    %v502 = vpack.c.b16 %v330, %v328
    %v503 = vpack.c.b16 %v333, %v331
    %v504 = vpack.c.b16 %v334, %v332
    %v505 = vpack.c.b16 %v337, %v335
    %v506 = vpack.c.b16 %v338, %v336
    %v507 = vpack.c.b16 %v341, %v339
    %v508 = vpack.c.b16 %v342, %v340
    %v509 = vpack.c.b16 %v345, %v343
    %v510 = vpack.c.b16 %v346, %v344
    %v511 = vpack.c.b16 %v349, %v347
    %v512 = vpack.c.b16 %v350, %v348
    %v513 = vpack.c.b16 %v353, %v351
    %v514 = vpack.c.b16 %v354, %v352
    %v515 = vpack.c.b16 %v357, %v355
    %v516 = vpack.c.b16 %v358, %v356
    %v517 = vpack.c.b16 %v361, %v359
    %v518 = vpack.c.b16 %v362, %v360
    %v519 = vpack.c.b16 %v365, %v363
    %v520 = vpack.c.b16 %v366, %v364
    %v521 = vpack.c.b16 %v369, %v367
    %v522 = vpack.c.b16 %v370, %v368
    %v523 = vpack.c.b16 %v373, %v371
    %v524 = vpack.c.b16 %v374, %v372
    %v525 = vpack.c.b16 %v377, %v375
    %v526 = vpack.c.b16 %v378, %v376
    %v527 = vpack.c.b16 %v381, %v379
    %v528 = vpack.c.b16 %v382, %v380
    %v529 = vpack.c.b16 %v385, %v383
    %v530 = vpack.c.b16 %v386, %v384
    %v531 = vpack.c.b16 %v389, %v387
    %v532 = vpack.c.b16 %v390, %v388
    %v533 = vpack.c.b16 %v393, %v391
    %v534 = vpack.c.b16 %v394, %v392
    %v535 = vpack.c.b16 %v397, %v395
    %v536 = vpack.c.b16 %v398, %v396
    %v537 = vpack.c.b16 %v401, %v399
    %v538 = vpack.c.b16 %v402, %v400
    %v539 = vpack.c.b16 %v405, %v403
    %v540 = vpack.c.b16 %v406, %v404
    %v541 = vpack.c.b16 %v409, %v407
    %v542 = vpack.c.b16 %v410, %v408
    %v543 = vpack.c.b16 %v413, %v411
    %v544 = vpack.c.b16 %v414, %v412
    %v545 = vpack.c.b16 %v417, %v415
    %v546 = vpack.c.b16 %v418, %v416
    %v547 = vpack.c.b16 %v421, %v419
    %v548 = vpack.c.b16 %v422, %v420
    %v549 = vpack.c.b16 %v425, %v423
    %v550 = vpack.c.b16 %v426, %v424
    %v551 = vpack.c.b16 %v429, %v427
    %v552 = vpack.c.b16 %v430, %v428
    %v553 = vpack.c.b16 %v433, %v431
    %v554 = vpack.c.b16 %v434, %v432
    %v555 = vpack.c.b16 %v437, %v435
    %v556 = vpack.c.b16 %v438, %v436
    %v557 = vpack.c.b16 %v441, %v439
    %v558 = vpack.c.b16 %v442, %v440
    %v559 = vpack.c.b16 %v445, %v443
    %v560 = vpack.c.b16 %v446, %v444
    %v561 = vpack.c.b16 %v449, %v447
    %v562 = vpack.c.b16 %v450, %v448
    %v563 = vpack.c.b16 %v453, %v451
    %v564 = vpack.c.b16 %v454, %v452
    %v565 = vpack.c.b16 %v457, %v455
    %v566 = vpack.c.b16 %v458, %v456
    %v567 = vpack.c.b16 %v461, %v459
    %v568 = vpack.c.b16 %v462, %v460
    %v569 = vpack.c.b16 %v465, %v463
    %v570 = vpack.c.b16 %v466, %v464
    %v571 = vpack.c.b16 %v469, %v467
    %v572 = vpack.c.b16 %v470, %v468
    %v573 = vpack.c.b16 %v473, %v471
    %v574 = vpack.c.b16 %v474, %v472
    %v575 = vpack.c.b16 %v477, %v475
    %v576 = vpack.c.b16 %v478, %v476
    %v577 = vpack.c.b16 %v481, %v479
    %v578 = vpack.c.b16 %v482, %v480
    %675 = vmatprep.subr.bf16.mxu0 %v498
    %676 = vmatpush1.bf16.msra.mxu0 %v497
    %677 = vmatprep.subr.bf16.mxu0 %v496
    %678 = vmatpush1.bf16.msra.mxu0 %v495
    %679 = vmatprep.subr.bf16.mxu0 %v494
    %680 = vmatpush1.bf16.msra.mxu0 %v493
    %681 = vmatprep.subr.bf16.mxu0 %v492
    %682 = vmatpush1.bf16.msra.mxu0 %v491
    %683 = vmatprep.subr.bf16.mxu0 %v490
    %684 = vmatpush1.bf16.msra.mxu0 %v489
    %685 = vmatprep.subr.bf16.mxu0 %v488
    %686 = vmatpush1.bf16.msra.mxu0 %v487
    %687 = vmatprep.subr.bf16.mxu0 %v486
    %688 = vmatpush1.bf16.msra.mxu0 %v485
    %689 = vmatprep.subr.bf16.mxu0 %v484
    %690 = vmatpush1.bf16.msra.mxu0 %v483
    %691 = vmatprep.subr.bf16.mxu0 %v514
    %692 = vmatpush2.bf16.msra.mxu0 %v513
    %693 = vmatprep.subr.bf16.mxu0 %v512
    %694 = vmatpush2.bf16.msra.mxu0 %v511
    %695 = vmatprep.subr.bf16.mxu0 %v510
    %696 = vmatpush2.bf16.msra.mxu0 %v509
    %697 = vmatprep.subr.bf16.mxu0 %v508
    %698 = vmatpush2.bf16.msra.mxu0 %v507
    %699 = vmatprep.subr.bf16.mxu0 %v506
    %700 = vmatpush2.bf16.msra.mxu0 %v505
    %701 = vmatprep.subr.bf16.mxu0 %v504
    %702 = vmatpush2.bf16.msra.mxu0 %v503
    %703 = vmatprep.subr.bf16.mxu0 %v502
    %704 = vmatpush2.bf16.msra.mxu0 %v501
    %705 = vmatprep.subr.bf16.mxu0 %v500
    %706 = vmatpush2.bf16.msra.mxu0 %v499
    %707 = vmatprep.mubr.bf16.mxu0 %v172
    %708 = vmatmul.mubr.bf16.gmra.mxu0 %v171
    %v709 = vpop.f32.mrf.mxu0
    %v710 = vadd.f32 %v128, %v709
    %v711 = vpop.f32.mrf.mxu0
    %v712 = vadd.f32 %v132, %v711
    %v713 = vpop.f32.mrf.mxu0
    %v714 = vadd.f32 %v128, %v713
    %v715 = vpop.f32.mrf.mxu0
    %v716 = vadd.f32 %v132, %v715
    %717 = vmatprep.mubr.bf16.mxu0 %v178
    %718 = vmatmul.mubr.bf16.gmra.mxu0 %v177
    %v719 = vpop.f32.mrf.mxu0
    %v720 = vadd.f32 %v128, %v719
    %v721 = vpop.f32.mrf.mxu0
    %v722 = vadd.f32 %v132, %v721
    %v723 = vpop.f32.mrf.mxu0
    %v724 = vadd.f32 %v128, %v723
    %v725 = vpop.f32.mrf.mxu0
    %v726 = vadd.f32 %v132, %v725
    %727 = vdwg.mxu0
    %728 = vmatprep.subr.bf16.mxu0 %v530
    %729 = vmatpush1.bf16.msra.mxu0 %v529
    %730 = vmatprep.subr.bf16.mxu0 %v528
    %731 = vmatpush1.bf16.msra.mxu0 %v527
    %732 = vmatprep.subr.bf16.mxu0 %v526
    %733 = vmatpush1.bf16.msra.mxu0 %v525
    %734 = vmatprep.subr.bf16.mxu0 %v524
    %735 = vmatpush1.bf16.msra.mxu0 %v523
    %736 = vmatprep.subr.bf16.mxu0 %v522
    %737 = vmatpush1.bf16.msra.mxu0 %v521
    %738 = vmatprep.subr.bf16.mxu0 %v520
    %739 = vmatpush1.bf16.msra.mxu0 %v519
    %740 = vmatprep.subr.bf16.mxu0 %v518
    %741 = vmatpush1.bf16.msra.mxu0 %v517
    %742 = vmatprep.subr.bf16.mxu0 %v516
    %743 = vmatpush1.bf16.msra.mxu0 %v515
    %744 = vmatprep.subr.bf16.mxu0 %v546
    %745 = vmatpush2.bf16.msra.mxu0 %v545
    %746 = vmatprep.subr.bf16.mxu0 %v544
    %747 = vmatpush2.bf16.msra.mxu0 %v543
    %748 = vmatprep.subr.bf16.mxu0 %v542
    %749 = vmatpush2.bf16.msra.mxu0 %v541
    %750 = vmatprep.subr.bf16.mxu0 %v540
    %751 = vmatpush2.bf16.msra.mxu0 %v539
    %752 = vmatprep.subr.bf16.mxu0 %v538
    %753 = vmatpush2.bf16.msra.mxu0 %v537
    %754 = vmatprep.subr.bf16.mxu0 %v536
    %755 = vmatpush2.bf16.msra.mxu0 %v535
    %756 = vmatprep.subr.bf16.mxu0 %v534
    %757 = vmatpush2.bf16.msra.mxu0 %v533
    %758 = vmatprep.subr.bf16.mxu0 %v532
    %759 = vmatpush2.bf16.msra.mxu0 %v531
    %760 = vmatprep.mubr.bf16.mxu0 %v174
    %761 = vmatmul.mubr.bf16.gmra.mxu0 %v173
    %v762 = vpop.f32.mrf.mxu0
    %v763 = vadd.f32 %v710, %v762
    %v764 = vpop.f32.mrf.mxu0
    %v765 = vadd.f32 %v712, %v764
    %v766 = vpop.f32.mrf.mxu0
    %v767 = vadd.f32 %v714, %v766
    %v768 = vpop.f32.mrf.mxu0
    %v769 = vadd.f32 %v716, %v768
    %770 = vmatprep.mubr.bf16.mxu0 %v180
    %771 = vmatmul.mubr.bf16.gmra.mxu0 %v179
    %v772 = vpop.f32.mrf.mxu0
    %v773 = vadd.f32 %v720, %v772
    %v774 = vpop.f32.mrf.mxu0
    %v775 = vadd.f32 %v722, %v774
    %v776 = vpop.f32.mrf.mxu0
    %v777 = vadd.f32 %v724, %v776
    %v778 = vpop.f32.mrf.mxu0
    %v779 = vadd.f32 %v726, %v778
    %780 = vdwg.mxu0
    %781 = vmatprep.subr.bf16.mxu0 %v562
    %782 = vmatpush1.bf16.msra.mxu0 %v561
    %783 = vmatprep.subr.bf16.mxu0 %v560
    %784 = vmatpush1.bf16.msra.mxu0 %v559
    %785 = vmatprep.subr.bf16.mxu0 %v558
    %786 = vmatpush1.bf16.msra.mxu0 %v557
    %787 = vmatprep.subr.bf16.mxu0 %v556
    %788 = vmatpush1.bf16.msra.mxu0 %v555
    %789 = vmatprep.subr.bf16.mxu0 %v554
    %790 = vmatpush1.bf16.msra.mxu0 %v553
    %791 = vmatprep.subr.bf16.mxu0 %v552
    %792 = vmatpush1.bf16.msra.mxu0 %v551
    %793 = vmatprep.subr.bf16.mxu0 %v550
    %794 = vmatpush1.bf16.msra.mxu0 %v549
    %795 = vmatprep.subr.bf16.mxu0 %v548
    %796 = vmatpush1.bf16.msra.mxu0 %v547
    %797 = vmatprep.subr.bf16.mxu0 %v578
    %798 = vmatpush2.bf16.msra.mxu0 %v577
    %799 = vmatprep.subr.bf16.mxu0 %v576
    %800 = vmatpush2.bf16.msra.mxu0 %v575
    %801 = vmatprep.subr.bf16.mxu0 %v574
    %802 = vmatpush2.bf16.msra.mxu0 %v573
    %803 = vmatprep.subr.bf16.mxu0 %v572
    %804 = vmatpush2.bf16.msra.mxu0 %v571
    %805 = vmatprep.subr.bf16.mxu0 %v570
    %806 = vmatpush2.bf16.msra.mxu0 %v569
    %807 = vmatprep.subr.bf16.mxu0 %v568
    %808 = vmatpush2.bf16.msra.mxu0 %v567
    %809 = vmatprep.subr.bf16.mxu0 %v566
    %810 = vmatpush2.bf16.msra.mxu0 %v565
    %811 = vmatprep.subr.bf16.mxu0 %v564
    %812 = vmatpush2.bf16.msra.mxu0 %v563
    %813 = vmatprep.mubr.bf16.mxu0 %v176
    %814 = vmatmul.mubr.bf16.gmra.mxu0 %v175
    %v815 = vpop.f32.mrf.mxu0
    %v816 = vadd.f32 %v763, %v815
    %v817 = vpop.f32.mrf.mxu0
    %v818 = vadd.f32 %v765, %v817
    %v819 = vpop.f32.mrf.mxu0
    %v820 = vadd.f32 %v767, %v819
    %v821 = vpop.f32.mrf.mxu0
    %v822 = vadd.f32 %v769, %v821
    %823 = vmatprep.mubr.bf16.mxu0 %v182
    %824 = vmatmul.mubr.bf16.gmra.mxu0 %v181
    %v825 = vpop.f32.mrf.mxu0
    %v826 = vadd.f32 %v773, %v825
    %v827 = vpop.f32.mrf.mxu0
    %v828 = vadd.f32 %v775, %v827
    %v829 = vpop.f32.mrf.mxu0
    %v830 = vadd.f32 %v777, %v829
    %v831 = vpop.f32.mrf.mxu0
    %v832 = vadd.f32 %v779, %v831
    %833 = vdwg.mxu0
    %834 = vst [vmem:[#allocation2] sm:$0xff] %v816
    %835 = vst [vmem:[#allocation2 + $0x8] sm:$0xff] %v818
    %836 = vst [vmem:[#allocation2 + $0x10] sm:$0xff] %v820
    %837 = vst [vmem:[#allocation2 + $0x18] sm:$0xff] %v822
    %838 = vst [vmem:[#allocation2 + $0x20] sm:$0xff] %v826
    %839 = vst [vmem:[#allocation2 + $0x28] sm:$0xff] %v828
    %840 = vst [vmem:[#allocation2 + $0x30] sm:$0xff] %v830
    %841 = vst [vmem:[#allocation2 + $0x38] sm:$0xff] %v832
    // Predicated region
    $region14: #{patch_embedding.1} parent=1 // pred_check
      _
    $region15: #{patch_embedding.1} parent=1 // pred_check_branch
      %843 = sbr.rel (0) target = $region17
    $region16: #{patch_embedding.1} parent=1 // pred_region
      %s845 = ssub.s32 1024, 1024
      %846 = vsyncadd [#allocation3], %s845
      %s847 = sshll.u32 [#allocation2], 4
      %s848 = int_to_ptr.vmem [resolvable:$true] %s847
      %853 = dma.vmem_to_hbm [thread:$0]  %s848, 1024, %s3, [#allocation3], 256, 256, 16
    $region17: #{patch_embedding.1} parent=1 // pred_fallthru
      _
    // Predicated region
    $region18: #{patch_embedding.1} parent=1 // pred_check
      _
    $region19: #{patch_embedding.1} parent=1 // pred_check_branch
      %855 = sbr.rel (0) target = $region21
    $region20: #{patch_embedding.1} parent=1 // pred_region
      %856 = dma.done [#allocation3], 1024
    $region21: #{patch_embedding.1} parent=1 // pred_fallthru
      _
    %857 = vsyncpa [#allocation3], 1

</llo_original>
